<compile_context>
chip_gen: v5e
topology: v5e:2x2
jax: 0.10.0
libtpu: 0.0.40
codegen_flags: <defaults>
</compile_context>

<pallas_src>
import functools

import jax
import jax.numpy as jnp
from jax.experimental import pallas as pl
from jax.experimental.pallas import tpu as pltpu

LANES = 128
# Row-tiles of 128 lanes per block; (3, 1024, 128) f32 = 1.5 MiB per buffer.
ROW_TILE = 1024
_VMEM_LIMIT_BYTES = 32 * 1024 * 1024


def _stats_kernel(x_ref, st_ref):
    """Pass 1: accumulate per-(batch, channel) lane partials of
    {count, sum, sum_sq}.

    x_ref  : (1, 3, R, 128) block of x viewed as (B, 3, NR, 128)
    st_ref : (1, 3, 3, 128) block of the (B, 3, 3, 128) partial-stats output,
             laid out (batch, channel, {cnt, sum, sum_sq}, lane); the block is
             VMEM-resident across the whole j sweep of this batch.
    """
    @pl.when(pl.program_id(1) == 0)
    def _init():
        st_ref[...] = jnp.zeros_like(st_ref)

    for c in range(3):                                       # static unroll
        x = x_ref[0, c].astype(jnp.float32)                  # (R, 128)
        valid = jnp.logical_not(jnp.isnan(x))
        xz = jnp.where(valid, x, 0.0)
        cnt = jnp.sum(valid.astype(jnp.float32), axis=0, keepdims=True)
        s = jnp.sum(xz, axis=0, keepdims=True)
        ss = jnp.sum(xz * xz, axis=0, keepdims=True)
        st_ref[0, c] += jnp.concatenate([cnt, s, ss], axis=0)   # (3, 128)


def _normalize_kernel(scal_ref, x_ref, o_ref):
    """Pass 2: y = (x - mean[c]) * inv_std[c]; NaN -> 0 (torch fill_nans).

    scal_ref : (2, 3) SMEM scalars [mean; inv_std] via scalar prefetch.
    x_ref / o_ref : (1, 3, R, 128) blocks; stores are lane-dense.
    """
    for c in range(3):                                       # static unroll
        y = (x_ref[0, c].astype(jnp.float32) - scal_ref[0, c]) * scal_ref[1, c]
        # NaN fill on the *result*: covers original NaNs and the 0*inf = NaN
        # case of a zero-variance channel, exactly like torch's
        # post-normalize 0/0 = NaN -> fill_nans.
        o_ref[0, c] = jnp.where(jnp.isnan(y), 0.0, y).astype(o_ref.dtype)


@functools.partial(jax.jit, static_argnames=("channels_last",))
def preprocessing_forward(x, channels_last=True):
    """Pallas TPU port of Preprocessing.forward.

    x: (B, 3, ...) floating array (anything reshapeable to (B, 3, -1)).
    Returns (B, N, 3) like the PyTorch module; channels_last=False returns the
    lane-dense (B, 3, N) layout (skips the final transpose).
    """
    B = x.shape[0]
    x3 = jnp.reshape(x, (B, 3, -1))            # free view (row-major)
    N = x3.shape[-1]

    # Lane/row tiling of the point axis. NaN padding is semantically inert:
    # masked out of the stats, filled to 0 in pass 2, sliced away below.
    nr0 = pl.cdiv(N, LANES)
    if nr0 <= ROW_TILE:
        rows = nr = nr0                        # single row-tile == full dim
    else:
        rows = ROW_TILE
        nr = pl.cdiv(nr0, rows) * rows
    n_pad = nr * LANES
    if n_pad != N:
        x3 = jnp.pad(x3, ((0, 0), (0, 0), (0, n_pad - N)),
                     constant_values=jnp.nan)
    x4 = jnp.reshape(x3, (B, 3, nr, LANES))    # free view (row-major)
    j_tiles = nr // rows

    # ---- pass 1: per-channel count / sum / sum-of-squares (1 read of x) ----
    stats = pl.pallas_call(
        _stats_kernel,
        out_shape=jax.ShapeDtypeStruct((B, 3, 3, LANES), jnp.float32),
        grid_spec=pltpu.PrefetchScalarGridSpec(
            num_scalar_prefetch=0,
            grid=(B, j_tiles),                 # j innermost: accumulator block
            in_specs=[pl.BlockSpec((1, 3, rows, LANES),
                                   lambda b, j: (b, 0, j, 0))],
            out_specs=pl.BlockSpec((1, 3, 3, LANES),
                                   lambda b, j: (b, 0, 0, 0)),
        ),
        compiler_params=pltpu.CompilerParams(
            dimension_semantics=("parallel", "arbitrary"),
            vmem_limit_bytes=_VMEM_LIMIT_BYTES,
        ),
    )(x4)

    # Tiny (B,3,3,128) final reduction + scalar math: leave to XLA.
    cnt = jnp.sum(stats[:, :, 0, :], axis=(0, 2))          # (3,)
    total = jnp.sum(stats[:, :, 1, :], axis=(0, 2))        # (3,)
    total_sq = jnp.sum(stats[:, :, 2, :], axis=(0, 2))     # (3,)
    mean = total / cnt
    # Population variance (unbiased=False) via E[x^2] - mean^2 (single-read
    # stats), clamped against f32 rounding. var == 0 -> inv_std = inf ->
    # 0*inf = NaN -> filled, matching torch's 0/0 = NaN -> fill_nans.
    var = jnp.maximum(total_sq / cnt - mean * mean, 0.0)
    inv_std = 1.0 / jnp.sqrt(var)
    scalars = jnp.stack([mean, inv_std]).astype(jnp.float32)   # (2, 3) -> SMEM

    # ---- pass 2: normalize + NaN fill (1 read of x, 1 lane-dense write) ----
    y4 = pl.pallas_call(
        _normalize_kernel,
        out_shape=jax.ShapeDtypeStruct((B, 3, nr, LANES), x.dtype),
        grid_spec=pltpu.PrefetchScalarGridSpec(
            num_scalar_prefetch=1,             # (mean, inv_std) scalars
            grid=(B, j_tiles),
            in_specs=[pl.BlockSpec((1, 3, rows, LANES),
                                   lambda b, j, _s: (b, 0, j, 0))],
            out_specs=pl.BlockSpec((1, 3, rows, LANES),
                                   lambda b, j, _s: (b, 0, j, 0)),
        ),
        compiler_params=pltpu.CompilerParams(
            dimension_semantics=("parallel", "parallel"),
            vmem_limit_bytes=_VMEM_LIMIT_BYTES,
        ),
    )(scalars, x4)

    y3 = jnp.reshape(y4, (B, 3, n_pad))[:, :, :N]
    if not channels_last:
        return y3                              # lane-dense (B, 3, N)
    # Single minor-dim transpose at the very end to match torch's (B, N, 3).
    return jnp.transpose(y3, (0, 2, 1))


if __name__ == "__main__":
    key = jax.random.PRNGKey(0)
    B, C, H, W = 2, 3, 16, 16
    x = jax.random.normal(key, (B, C, H, W), dtype=jnp.float32)

    # NaNs aligned across the 3 channels (whole "points" missing), matching the
    # structure the PyTorch module's x[~isnan(x)].view(-1, 3) assumes.
    nan_mask = jnp.zeros((B, 1, H, W), dtype=bool).at[:, :, 0:2, 0:3].set(True)
    x = jnp.where(jnp.broadcast_to(nan_mask, x.shape), jnp.nan, x)

    out = jax.block_until_ready(preprocessing_forward(x))

    # Pure-JAX reference mirroring the PyTorch module.
    def reference(xx):
        b = xx.shape[0]
        x3 = jnp.transpose(jnp.reshape(xx, (b, 3, -1)), (0, 2, 1))   # (B,N,3)
        m = jnp.logical_not(jnp.isnan(x3))
        n_valid = jnp.sum(m, axis=(0, 1))
        xz = jnp.where(m, x3, 0.0)
        mu = jnp.sum(xz, axis=(0, 1)) / n_valid
        var = jnp.sum(jnp.where(m, (x3 - mu) ** 2, 0.0), axis=(0, 1)) / n_valid
        y = (x3 - mu) / jnp.sqrt(var)
        return jnp.where(jnp.isnan(y), 0.0, y)

    ref = reference(x)
    assert out.shape == (B, H * W, 3), out.shape
    assert not bool(jnp.any(jnp.isnan(out)))
    assert bool(jnp.allclose(out, ref, rtol=1e-4, atol=1e-4)), (
        float(jnp.max(jnp.abs(out - ref))))
    print("KERNEL_OK")
</pallas_src>

<mosaic_0001>
module attributes {stable_mosaic.version = 11 : i64} {
  func.func @_stats_kernel(%arg0: i32, %arg1: i32, %arg2: memref<1x3x2x128xf32, #tpu.memory_space<vmem>>, %arg3: memref<1x3x3x128xf32, #tpu.memory_space<vmem>>) attributes {dimension_semantics = [#tpu.dimension_semantics<parallel>, #tpu.dimension_semantics<arbitrary>], iteration_bounds = array<i64: 2, 1>, scalar_prefetch = 0 : i64, scratch_operands = 0 : i64, tpu.core_type = #tpu.core_type<tc>, window_params = [{transform_indices = @transform_0, window_bounds = array<i64: 1, 3, 2, 128>}, {transform_indices = @transform_1, window_bounds = array<i64: 1, 3, 3, 128>}]} {
    %c0_i32 = arith.constant 0 : i32
    %0 = arith.cmpi eq, %arg1, %c0_i32 : i32
    %1 = arith.extui %0 : i1 to i32
    %c0_i32_0 = arith.constant 0 : i32
    %2 = arith.cmpi ne, %1, %c0_i32_0 : i32
    scf.if %2 {
      %cst_48 = arith.constant 0.000000e+00 : f32
      %69 = vector.broadcast %cst_48 : f32 to vector<1x3x3x128xf32>
      %c0_49 = arith.constant 0 : index
      %c0_50 = arith.constant 0 : index
      %c0_51 = arith.constant 0 : index
      %c0_52 = arith.constant 0 : index
      %70 = vector.load %arg3[%c0_49, %c0_50, %c0_51, %c0_52] : memref<1x3x3x128xf32, #tpu.memory_space<vmem>>, vector<1x3x3x128xf32>
      tpu.vector_store %arg3[%c0_49, %c0_50, %c0_51, %c0_52], %69 {strides = array<i32>} : memref<1x3x3x128xf32, #tpu.memory_space<vmem>>, vector<1x3x3x128xf32>,
    } else {
    }
    %c0 = arith.constant 0 : index
    %c0_1 = arith.constant 0 : index
    %c0_2 = arith.constant 0 : index
    %c0_3 = arith.constant 0 : index
    %3 = vector.load %arg2[%c0, %c0_1, %c0_2, %c0_3] : memref<1x3x2x128xf32, #tpu.memory_space<vmem>>, vector<1x1x2x128xf32>
    %4 = vector.shape_cast %3 : vector<1x1x2x128xf32> to vector<2x128xf32>
    %5 = arith.cmpf one, %4, %4 : vector<2x128xf32>
    %cst = arith.constant dense<true> : vector<2x128xi1>
    %6 = arith.xori %5, %cst : vector<2x128xi1>
    %cst_4 = arith.constant 0.000000e+00 : f32
    %7 = vector.broadcast %cst_4 : f32 to vector<2x128xf32>
    %8 = arith.select %6, %4, %7 : vector<2x128xi1>, vector<2x128xf32>
    %9 = arith.extui %6 : vector<2x128xi1> to vector<2x128xi32>
    %10 = arith.sitofp %9 : vector<2x128xi32> to vector<2x128xf32>
    %cst_5 = arith.constant dense<0.000000e+00> : vector<128xf32>
    %11 = vector.multi_reduction <add>, %10, %cst_5 [0] : vector<2x128xf32> to vector<128xf32>
    %12 = vector.shape_cast %11 : vector<128xf32> to vector<1x128xf32>
    %cst_6 = arith.constant dense<0.000000e+00> : vector<128xf32>
    %13 = vector.multi_reduction <add>, %8, %cst_6 [0] : vector<2x128xf32> to vector<128xf32>
    %14 = vector.shape_cast %13 : vector<128xf32> to vector<1x128xf32>
    %15 = arith.mulf %8, %8 : vector<2x128xf32>
    %cst_7 = arith.constant dense<0.000000e+00> : vector<128xf32>
    %16 = vector.multi_reduction <add>, %15, %cst_7 [0] : vector<2x128xf32> to vector<128xf32>
    %17 = vector.shape_cast %16 : vector<128xf32> to vector<1x128xf32>
    %c0_8 = arith.constant 0 : index
    %c0_9 = arith.constant 0 : index
    %c0_10 = arith.constant 0 : index
    %c0_11 = arith.constant 0 : index
    %18 = vector.load %arg3[%c0_8, %c0_9, %c0_10, %c0_11] : memref<1x3x3x128xf32, #tpu.memory_space<vmem>>, vector<1x1x3x128xf32>
    %19 = vector.shape_cast %18 : vector<1x1x3x128xf32> to vector<3x128xf32>
    %20 = tpu.concatenate %12, %14, %17 in 0 : vector<1x128xf32>, vector<1x128xf32>, vector<1x128xf32> -> vector<3x128xf32>
    %21 = arith.addf %19, %20 : vector<3x128xf32>
    %c0_12 = arith.constant 0 : index
    %c0_13 = arith.constant 0 : index
    %c0_14 = arith.constant 0 : index
    %c0_15 = arith.constant 0 : index
    %22 = vector.load %arg3[%c0_12, %c0_13, %c0_14, %c0_15] : memref<1x3x3x128xf32, #tpu.memory_space<vmem>>, vector<1x1x3x128xf32>
    %23 = vector.shape_cast %22 : vector<1x1x3x128xf32> to vector<3x128xf32>
    %24 = vector.shape_cast %21 : vector<3x128xf32> to vector<1x1x3x128xf32>
    tpu.vector_store %arg3[%c0_12, %c0_13, %c0_14, %c0_15], %24 {strides = array<i32>} : memref<1x3x3x128xf32, #tpu.memory_space<vmem>>, vector<1x1x3x128xf32>,
    %c0_16 = arith.constant 0 : index
    %c1 = arith.constant 1 : index
    %c0_17 = arith.constant 0 : index
    %c0_18 = arith.constant 0 : index
    %25 = vector.load %arg2[%c0_16, %c1, %c0_17, %c0_18] : memref<1x3x2x128xf32, #tpu.memory_space<vmem>>, vector<1x1x2x128xf32>
    %26 = vector.shape_cast %25 : vector<1x1x2x128xf32> to vector<2x128xf32>
    %27 = arith.cmpf one, %26, %26 : vector<2x128xf32>
    %cst_19 = arith.constant dense<true> : vector<2x128xi1>
    %28 = arith.xori %27, %cst_19 : vector<2x128xi1>
    %cst_20 = arith.constant 0.000000e+00 : f32
    %29 = vector.broadcast %cst_20 : f32 to vector<2x128xf32>
    %30 = arith.select %28, %26, %29 : vector<2x128xi1>, vector<2x128xf32>
    %31 = arith.extui %28 : vector<2x128xi1> to vector<2x128xi32>
    %32 = arith.sitofp %31 : vector<2x128xi32> to vector<2x128xf32>
    %cst_21 = arith.constant dense<0.000000e+00> : vector<128xf32>
    %33 = vector.multi_reduction <add>, %32, %cst_21 [0] : vector<2x128xf32> to vector<128xf32>
    %34 = vector.shape_cast %33 : vector<128xf32> to vector<1x128xf32>
    %cst_22 = arith.constant dense<0.000000e+00> : vector<128xf32>
    %35 = vector.multi_reduction <add>, %30, %cst_22 [0] : vector<2x128xf32> to vector<128xf32>
    %36 = vector.shape_cast %35 : vector<128xf32> to vector<1x128xf32>
    %37 = arith.mulf %30, %30 : vector<2x128xf32>
    %cst_23 = arith.constant dense<0.000000e+00> : vector<128xf32>
    %38 = vector.multi_reduction <add>, %37, %cst_23 [0] : vector<2x128xf32> to vector<128xf32>
    %39 = vector.shape_cast %38 : vector<128xf32> to vector<1x128xf32>
    %c0_24 = arith.constant 0 : index
    %c1_25 = arith.constant 1 : index
    %c0_26 = arith.constant 0 : index
    %c0_27 = arith.constant 0 : index
    %40 = vector.load %arg3[%c0_24, %c1_25, %c0_26, %c0_27] : memref<1x3x3x128xf32, #tpu.memory_space<vmem>>, vector<1x1x3x128xf32>
    %41 = vector.shape_cast %40 : vector<1x1x3x128xf32> to vector<3x128xf32>
    %42 = tpu.concatenate %34, %36, %39 in 0 : vector<1x128xf32>, vector<1x128xf32>, vector<1x128xf32> -> vector<3x128xf32>
    %43 = arith.addf %41, %42 : vector<3x128xf32>
    %c0_28 = arith.constant 0 : index
    %c1_29 = arith.constant 1 : index
    %c0_30 = arith.constant 0 : index
    %c0_31 = arith.constant 0 : index
    %44 = vector.load %arg3[%c0_28, %c1_29, %c0_30, %c0_31] : memref<1x3x3x128xf32, #tpu.memory_space<vmem>>, vector<1x1x3x128xf32>
    %45 = vector.shape_cast %44 : vector<1x1x3x128xf32> to vector<3x128xf32>
    %46 = vector.shape_cast %43 : vector<3x128xf32> to vector<1x1x3x128xf32>
    tpu.vector_store %arg3[%c0_28, %c1_29, %c0_30, %c0_31], %46 {strides = array<i32>} : memref<1x3x3x128xf32, #tpu.memory_space<vmem>>, vector<1x1x3x128xf32>,
    %c0_32 = arith.constant 0 : index
    %c2 = arith.constant 2 : index
    %c0_33 = arith.constant 0 : index
    %c0_34 = arith.constant 0 : index
    %47 = vector.load %arg2[%c0_32, %c2, %c0_33, %c0_34] : memref<1x3x2x128xf32, #tpu.memory_space<vmem>>, vector<1x1x2x128xf32>
    %48 = vector.shape_cast %47 : vector<1x1x2x128xf32> to vector<2x128xf32>
    %49 = arith.cmpf one, %48, %48 : vector<2x128xf32>
    %cst_35 = arith.constant dense<true> : vector<2x128xi1>
    %50 = arith.xori %49, %cst_35 : vector<2x128xi1>
    %cst_36 = arith.constant 0.000000e+00 : f32
    %51 = vector.broadcast %cst_36 : f32 to vector<2x128xf32>
    %52 = arith.select %50, %48, %51 : vector<2x128xi1>, vector<2x128xf32>
    %53 = arith.extui %50 : vector<2x128xi1> to vector<2x128xi32>
    %54 = arith.sitofp %53 : vector<2x128xi32> to vector<2x128xf32>
    %cst_37 = arith.constant dense<0.000000e+00> : vector<128xf32>
    %55 = vector.multi_reduction <add>, %54, %cst_37 [0] : vector<2x128xf32> to vector<128xf32>
    %56 = vector.shape_cast %55 : vector<128xf32> to vector<1x128xf32>
    %cst_38 = arith.constant dense<0.000000e+00> : vector<128xf32>
    %57 = vector.multi_reduction <add>, %52, %cst_38 [0] : vector<2x128xf32> to vector<128xf32>
    %58 = vector.shape_cast %57 : vector<128xf32> to vector<1x128xf32>
    %59 = arith.mulf %52, %52 : vector<2x128xf32>
    %cst_39 = arith.constant dense<0.000000e+00> : vector<128xf32>
    %60 = vector.multi_reduction <add>, %59, %cst_39 [0] : vector<2x128xf32> to vector<128xf32>
    %61 = vector.shape_cast %60 : vector<128xf32> to vector<1x128xf32>
    %c0_40 = arith.constant 0 : index
    %c2_41 = arith.constant 2 : index
    %c0_42 = arith.constant 0 : index
    %c0_43 = arith.constant 0 : index
    %62 = vector.load %arg3[%c0_40, %c2_41, %c0_42, %c0_43] : memref<1x3x3x128xf32, #tpu.memory_space<vmem>>, vector<1x1x3x128xf32>
    %63 = vector.shape_cast %62 : vector<1x1x3x128xf32> to vector<3x128xf32>
    %64 = tpu.concatenate %56, %58, %61 in 0 : vector<1x128xf32>, vector<1x128xf32>, vector<1x128xf32> -> vector<3x128xf32>
    %65 = arith.addf %63, %64 : vector<3x128xf32>
    %c0_44 = arith.constant 0 : index
    %c2_45 = arith.constant 2 : index
    %c0_46 = arith.constant 0 : index
    %c0_47 = arith.constant 0 : index
    %66 = vector.load %arg3[%c0_44, %c2_45, %c0_46, %c0_47] : memref<1x3x3x128xf32, #tpu.memory_space<vmem>>, vector<1x1x3x128xf32>
    %67 = vector.shape_cast %66 : vector<1x1x3x128xf32> to vector<3x128xf32>
    %68 = vector.shape_cast %65 : vector<3x128xf32> to vector<1x1x3x128xf32>
    tpu.vector_store %arg3[%c0_44, %c2_45, %c0_46, %c0_47], %68 {strides = array<i32>} : memref<1x3x3x128xf32, #tpu.memory_space<vmem>>, vector<1x1x3x128xf32>,
    return
  }
  func.func @transform_0(%arg0: i32, %arg1: i32) -> (i32, i32, i32, i32) {
    %c0_i32 = arith.constant 0 : i32
    %c0_i32_0 = arith.constant 0 : i32
    %c0_i32_1 = arith.constant 0 : i32
    return %arg0, %c0_i32, %arg1, %c0_i32_0 : i32, i32, i32, i32
  }
  func.func @transform_1(%arg0: i32, %arg1: i32) -> (i32, i32, i32, i32) {
    %c0_i32 = arith.constant 0 : i32
    %c0_i32_0 = arith.constant 0 : i32
    %c0_i32_1 = arith.constant 0 : i32
    %c0_i32_2 = arith.constant 0 : i32
    return %arg0, %c0_i32, %c0_i32_0, %c0_i32_1 : i32, i32, i32, i32
  }
}

module attributes {stable_mosaic.version = 11 : i64} {
  func.func @_normalize_kernel(%arg0: i32, %arg1: i32, %arg2: memref<2x3xf32, #tpu.memory_space<smem>>, %arg3: memref<1x3x2x128xf32, #tpu.memory_space<vmem>>, %arg4: memref<1x3x2x128xf32, #tpu.memory_space<vmem>>) attributes {dimension_semantics = [#tpu.dimension_semantics<parallel>, #tpu.dimension_semantics<parallel>], iteration_bounds = array<i64: 2, 1>, scalar_prefetch = 1 : i64, scratch_operands = 0 : i64, tpu.core_type = #tpu.core_type<tc>, window_params = [{transform_indices = @transform_0, window_bounds = array<i64: 1, 3, 2, 128>}, {transform_indices = @transform_1, window_bounds = array<i64: 1, 3, 2, 128>}]} {
    %c0 = arith.constant 0 : index
    %c0_0 = arith.constant 0 : index
    %c0_1 = arith.constant 0 : index
    %c0_2 = arith.constant 0 : index
    %0 = vector.load %arg3[%c0, %c0_0, %c0_1, %c0_2] : memref<1x3x2x128xf32, #tpu.memory_space<vmem>>, vector<1x1x2x128xf32>
    %1 = vector.shape_cast %0 : vector<1x1x2x128xf32> to vector<2x128xf32>
    %c0_3 = arith.constant 0 : index
    %c0_4 = arith.constant 0 : index
    %2 = memref.load %arg2[%c0_3, %c0_4] : memref<2x3xf32, #tpu.memory_space<smem>>
    %3 = vector.broadcast %2 : f32 to vector<2x128xf32>
    %4 = arith.subf %1, %3 : vector<2x128xf32>
    %c1 = arith.constant 1 : index
    %c0_5 = arith.constant 0 : index
    %5 = memref.load %arg2[%c1, %c0_5] : memref<2x3xf32, #tpu.memory_space<smem>>
    %6 = vector.broadcast %5 : f32 to vector<2x128xf32>
    %7 = arith.mulf %4, %6 : vector<2x128xf32>
    %8 = arith.cmpf one, %7, %7 : vector<2x128xf32>
    %cst = arith.constant 0.000000e+00 : f32
    %9 = vector.broadcast %cst : f32 to vector<2x128xf32>
    %10 = arith.select %8, %9, %7 : vector<2x128xi1>, vector<2x128xf32>
    %c0_6 = arith.constant 0 : index
    %c0_7 = arith.constant 0 : index
    %c0_8 = arith.constant 0 : index
    %c0_9 = arith.constant 0 : index
    %11 = vector.load %arg4[%c0_6, %c0_7, %c0_8, %c0_9] : memref<1x3x2x128xf32, #tpu.memory_space<vmem>>, vector<1x1x2x128xf32>
    %12 = vector.shape_cast %11 : vector<1x1x2x128xf32> to vector<2x128xf32>
    %13 = vector.shape_cast %10 : vector<2x128xf32> to vector<1x1x2x128xf32>
    tpu.vector_store %arg4[%c0_6, %c0_7, %c0_8, %c0_9], %13 {strides = array<i32>} : memref<1x3x2x128xf32, #tpu.memory_space<vmem>>, vector<1x1x2x128xf32>,
    %c0_10 = arith.constant 0 : index
    %c1_11 = arith.constant 1 : index
    %c0_12 = arith.constant 0 : index
    %c0_13 = arith.constant 0 : index
    %14 = vector.load %arg3[%c0_10, %c1_11, %c0_12, %c0_13] : memref<1x3x2x128xf32, #tpu.memory_space<vmem>>, vector<1x1x2x128xf32>
    %15 = vector.shape_cast %14 : vector<1x1x2x128xf32> to vector<2x128xf32>
    %c0_14 = arith.constant 0 : index
    %c1_15 = arith.constant 1 : index
    %16 = memref.load %arg2[%c0_14, %c1_15] : memref<2x3xf32, #tpu.memory_space<smem>>
    %17 = vector.broadcast %16 : f32 to vector<2x128xf32>
    %18 = arith.subf %15, %17 : vector<2x128xf32>
    %c1_16 = arith.constant 1 : index
    %c1_17 = arith.constant 1 : index
    %19 = memref.load %arg2[%c1_16, %c1_17] : memref<2x3xf32, #tpu.memory_space<smem>>
    %20 = vector.broadcast %19 : f32 to vector<2x128xf32>
    %21 = arith.mulf %18, %20 : vector<2x128xf32>
    %22 = arith.cmpf one, %21, %21 : vector<2x128xf32>
    %cst_18 = arith.constant 0.000000e+00 : f32
    %23 = vector.broadcast %cst_18 : f32 to vector<2x128xf32>
    %24 = arith.select %22, %23, %21 : vector<2x128xi1>, vector<2x128xf32>
    %c0_19 = arith.constant 0 : index
    %c1_20 = arith.constant 1 : index
    %c0_21 = arith.constant 0 : index
    %c0_22 = arith.constant 0 : index
    %25 = vector.load %arg4[%c0_19, %c1_20, %c0_21, %c0_22] : memref<1x3x2x128xf32, #tpu.memory_space<vmem>>, vector<1x1x2x128xf32>
    %26 = vector.shape_cast %25 : vector<1x1x2x128xf32> to vector<2x128xf32>
    %27 = vector.shape_cast %24 : vector<2x128xf32> to vector<1x1x2x128xf32>
    tpu.vector_store %arg4[%c0_19, %c1_20, %c0_21, %c0_22], %27 {strides = array<i32>} : memref<1x3x2x128xf32, #tpu.memory_space<vmem>>, vector<1x1x2x128xf32>,
    %c0_23 = arith.constant 0 : index
    %c2 = arith.constant 2 : index
    %c0_24 = arith.constant 0 : index
    %c0_25 = arith.constant 0 : index
    %28 = vector.load %arg3[%c0_23, %c2, %c0_24, %c0_25] : memref<1x3x2x128xf32, #tpu.memory_space<vmem>>, vector<1x1x2x128xf32>
    %29 = vector.shape_cast %28 : vector<1x1x2x128xf32> to vector<2x128xf32>
    %c0_26 = arith.constant 0 : index
    %c2_27 = arith.constant 2 : index
    %30 = memref.load %arg2[%c0_26, %c2_27] : memref<2x3xf32, #tpu.memory_space<smem>>
    %31 = vector.broadcast %30 : f32 to vector<2x128xf32>
    %32 = arith.subf %29, %31 : vector<2x128xf32>
    %c1_28 = arith.constant 1 : index
    %c2_29 = arith.constant 2 : index
    %33 = memref.load %arg2[%c1_28, %c2_29] : memref<2x3xf32, #tpu.memory_space<smem>>
    %34 = vector.broadcast %33 : f32 to vector<2x128xf32>
    %35 = arith.mulf %32, %34 : vector<2x128xf32>
    %36 = arith.cmpf one, %35, %35 : vector<2x128xf32>
    %cst_30 = arith.constant 0.000000e+00 : f32
    %37 = vector.broadcast %cst_30 : f32 to vector<2x128xf32>
    %38 = arith.select %36, %37, %35 : vector<2x128xi1>, vector<2x128xf32>
    %c0_31 = arith.constant 0 : index
    %c2_32 = arith.constant 2 : index
    %c0_33 = arith.constant 0 : index
    %c0_34 = arith.constant 0 : index
    %39 = vector.load %arg4[%c0_31, %c2_32, %c0_33, %c0_34] : memref<1x3x2x128xf32, #tpu.memory_space<vmem>>, vector<1x1x2x128xf32>
    %40 = vector.shape_cast %39 : vector<1x1x2x128xf32> to vector<2x128xf32>
    %41 = vector.shape_cast %38 : vector<2x128xf32> to vector<1x1x2x128xf32>
    tpu.vector_store %arg4[%c0_31, %c2_32, %c0_33, %c0_34], %41 {strides = array<i32>} : memref<1x3x2x128xf32, #tpu.memory_space<vmem>>, vector<1x1x2x128xf32>,
    return
  }
  func.func @transform_0(%arg0: i32, %arg1: i32, %arg2: memref<2x3xf32, #tpu.memory_space<smem>>) -> (i32, i32, i32, i32) {
    %c0_i32 = arith.constant 0 : i32
    %c0_i32_0 = arith.constant 0 : i32
    %c0_i32_1 = arith.constant 0 : i32
    return %arg0, %c0_i32, %arg1, %c0_i32_0 : i32, i32, i32, i32
  }
  func.func @transform_1(%arg0: i32, %arg1: i32, %arg2: memref<2x3xf32, #tpu.memory_space<smem>>) -> (i32, i32, i32, i32) {
    %c0_i32 = arith.constant 0 : i32
    %c0_i32_0 = arith.constant 0 : i32
    %c0_i32_1 = arith.constant 0 : i32
    return %arg0, %c0_i32, %arg1, %c0_i32_0 : i32, i32, i32, i32
  }
}

</mosaic_0001>

<llo_original>
// kernel: preprocessing_forward.3
$region0: #{preprocessing_forward.3}
  #allocation0 [shape = 'u32[]', space=smem, size = 0x4, offset = 0x4, fixed_abs, tag = 'smem constant byte address 0x4 - core index']
  #allocation1 [shape = 'u32[72,128]{1,0:T(1,128)}', space=vmem, size = 0x9000, scoped, tag = 'internal scratch']
  #allocation2 [shape = 's32[1]{0}', space=sflag, size = 0x4, scoped, tag = 'scoped memory for preprocessing_forward.3']
  #allocation3 [shape = 'u8[1024]{0}', space=smem, size = 0x400, scoped, tag = 'prefetched SMEM operand 0']
  %s0 = inlined_call_operand.vmem [shape: f32[2,3], index: 0, kind: input, shape index: {}]
  %s1 = inlined_call_operand.vmem [shape: f32[2,3,2,128], index: 1, kind: input, shape index: {}]
  %s2 = inlined_call_operand.vmem [shape: f32[2,3,2,128], index: 2, kind: output, shape index: {}]
  %s3 = sld [smem:[#allocation0]]
  $region37: #{preprocessing_forward.3} parent=0
    _
  %s5 = ssub.s32 1, %s3
  %s6 = scalar_select 0, %s5, %s3
  %s8 = sshll.u32 %s0, 4
  %s9 = int_to_ptr.vmem [resolvable:$true] %s8
  %11 = dma.vmem_to_smem %s9, 32, [#allocation3], [#allocation2]
  %13 = dma.done [#allocation2], 32
  %14 = sfence
  loop: start=0, step=1, limit=4
  $region2: #{preprocessing_forward.3} parent=0 // loop_pre_header
    _
  $region3: #{preprocessing_forward.3} parent=0 // loop_header
    %s16 = sphi 0, %s20
    %p17 = scmp.ge.s32.totalorder %s16, 4
    %s23 = sphi 0, %s35
    %s24 = sphi 0, %s31
    %s25 = sphi 0, %s23
    %s26 = sphi 0, %s24
    %s27 = sphi 0, %s25
    %s28 = sphi 0, %s26
    %s40 = sphi 0, %s42
    %s43 = sphi 0, %s40
    %s44 = sphi 0, %s43
    %s60 = sphi 0, %s44
    %s68 = sphi 0, %s70
    %s71 = sphi 0, %s68
    %s72 = sphi 0, %s71
    %s88 = sphi 0, %s72
  $region4: #{preprocessing_forward.3} parent=0 // loop_header_branch
    %19 = sbr.rel (%p17) target = $region8
  $region5: #{preprocessing_forward.3} parent=0 // loop_body
    %s21 = ssub.s32 %s16, 1
    %s22 = ssub.s32 %s16, 2
    %s29 = sadd.s32 1, %s24
    %p30 = scmp.ge.s32.totalorder %s29, 1
    %s31 = scalar_select %p30, 0, %s29
    %s32 = sadd.s32 1, %s23
    %s33 = scalar_select %p30, %s32, %s23
    %p34 = scmp.ge.s32.totalorder %s33, 2
    %s35 = scalar_select %p34, 0, %s33
    %s36 = ssub.s32 %s23, %s35
    %s37 = ssub.s32 %s24, %s31
    %s38 = sor.u32 %s36, %s37
    %p39 = scmp.eq.s32.totalorder %s38, 0
    %s41 = sadd.s32 %s40, 1
    %s42 = scalar_select %p39, %s40, %s41
    %p45 = pneg %p39
    %p46 = scmp.eq.s32.totalorder %s16, 1
    %p47 = por %p45, %p46
    %p48 = scmp.ne.s32.totalorder %s40, %s43
    %p49 = scmp.eq.s32.totalorder %s16, 0
    %p50 = por %p48, %p49
    %p51 = scmp.ne.s32.totalorder %s40, %s43
    %p52 = scmp.eq.s32.totalorder %s21, 1
    %p53 = por %p51, %p52
    %p54 = scmp.ne.s32.totalorder %s43, %s44
    %p55 = scmp.eq.s32.totalorder %s21, 0
    %p56 = por %p54, %p55
    %p57 = scmp.ne.s32.totalorder %s43, %s44
    %p58 = scmp.eq.s32.totalorder %s22, 1
    %p59 = por %p57, %p58
    %p61 = scmp.ne.s32.totalorder %s44, %s60
    %p62 = scmp.eq.s32.totalorder %s22, 0
    %p63 = por %p61, %p62
    %s64 = ssub.s32 %s23, %s35
    %s65 = ssub.s32 %s24, %s31
    %s66 = sor.u32 %s64, %s65
    %p67 = scmp.eq.s32.totalorder %s66, 0
    %s69 = sadd.s32 %s68, 1
    %s70 = scalar_select %p67, %s68, %s69
    %p73 = pneg %p67
    %p74 = scmp.eq.s32.totalorder %s16, 1
    %p75 = por %p73, %p74
    %p76 = scmp.ne.s32.totalorder %s68, %s71
    %p77 = scmp.eq.s32.totalorder %s16, 0
    %p78 = por %p76, %p77
    %p79 = scmp.ne.s32.totalorder %s68, %s71
    %p80 = scmp.eq.s32.totalorder %s21, 1
    %p81 = por %p79, %p80
    %p82 = scmp.ne.s32.totalorder %s71, %s72
    %p83 = scmp.eq.s32.totalorder %s21, 0
    %p84 = por %p82, %p83
    %p85 = scmp.ne.s32.totalorder %s71, %s72
    %p86 = scmp.eq.s32.totalorder %s22, 1
    %p87 = por %p85, %p86
    %p89 = scmp.ne.s32.totalorder %s72, %s88
    %p90 = scmp.eq.s32.totalorder %s22, 0
    %p91 = por %p89, %p90
    %p92 = scmp.le.s32.totalorder 1, %s16
    %p93 = scmp.lt.s32.totalorder %s16, 3
    %p94 = pnand %p92, %p93
    %p95 = pneg %p94
    // Predicated region
    $region9: #{preprocessing_forward.3} parent=5 // pred_check
      _
    $region10: #{preprocessing_forward.3} parent=5 // pred_check_branch
      %97 = sbr.rel (%p94) target = $region12
    $region11: #{preprocessing_forward.3} parent=5 // pred_region
      %s98 = ssub.s32 %s16, 1
    $region12: #{preprocessing_forward.3} parent=5 // pred_fallthru
      _
    %p99 = scmp.lt.s32.totalorder %s16, 2
    // Predicated region
    $region13: #{preprocessing_forward.3} parent=5 // pred_check
      %p100 = pneg %p99
    $region14: #{preprocessing_forward.3} parent=5 // pred_check_branch
      %102 = sbr.rel (%p100) target = $region16
    $region15: #{preprocessing_forward.3} parent=5 // pred_region
      // Predicated region
      $region17: #{preprocessing_forward.3} parent=15 // pred_check
        %p103 = pneg %p50
      $region18: #{preprocessing_forward.3} parent=15 // pred_check_branch
        %105 = sbr.rel (%p103) target = $region20
      $region19: #{preprocessing_forward.3} parent=15 // pred_region
        %p106 = scmp.lt.s32.totalorder %s23, 1
        %s107 = scalar_select %p106, %s23, 1
        %p108 = scmp.lt.s32.totalorder %s24, 0
        %s109 = scalar_select %p108, %s24, 0
        %s110 = smul.addr %s107, 3
        %s111 = sadd.s32 %s109, %s110
        %s112 = smul.addr %s111, 2
        %s113 = scalar_lea.vmem %s1, %s112
      $region20: #{preprocessing_forward.3} parent=15 // pred_fallthru
        _
    $region16: #{preprocessing_forward.3} parent=5 // pred_fallthru
      _
    %p114 = scmp.le.s32.totalorder 1, %s16
    %p115 = scmp.lt.s32.totalorder %s16, 3
    %p116 = pnand %p114, %p115
    %p117 = pneg %p116
    // Predicated region
    $region21: #{preprocessing_forward.3} parent=5 // pred_check
      _
    $region22: #{preprocessing_forward.3} parent=5 // pred_check_branch
      %119 = sbr.rel (%p116) target = $region24
    $region23: #{preprocessing_forward.3} parent=5 // pred_region
      %s120 = ssub.s32 %s16, 1
      %p121 = scmp.lt.s32.totalorder %s25, 1
      %s122 = scalar_select %p121, %s25, 1
      %p123 = scmp.lt.s32.totalorder %s26, 0
      %s124 = scalar_select %p123, %s26, 0
      %s125 = smul.addr %s122, 3
      %s126 = sadd.s32 %s124, %s125
      %s127 = smul.addr %s126, 2
      %s128 = scalar_lea.vmem %s1, %s127
      %p129 = pneg %p56
      %p130 = pneg %p53
      %p131 = pneg %p84
      %p132 = pneg %p81
      %p133 = scmp.lt.s32.totalorder %s25, 1
      %s134 = scalar_select %p133, %s25, 1
      %p135 = scmp.lt.s32.totalorder %s26, 0
      %s136 = scalar_select %p135, %s26, 0
      %s137 = smul.addr %s134, 3
      %s138 = sadd.s32 %s136, %s137
      %s139 = smul.addr %s138, 2
      %s140 = scalar_lea.vmem %s2, %s139
      %p141 = scmp.lt.s32.totalorder %s25, 1
      %s142 = scalar_select %p141, %s25, 1
      %p143 = scmp.lt.s32.totalorder %s26, 0
      %s144 = scalar_select %p143, %s26, 0
      %s145 = smul.addr %s142, 3
      %s146 = sadd.s32 %s144, %s145
      %s147 = smul.addr %s146, 2
      %s148 = scalar_lea.vmem %s1, %s147
      %p149 = scmp.lt.s32.totalorder %s25, 1
      %s150 = scalar_select %p149, %s25, 1
      %p151 = scmp.lt.s32.totalorder %s26, 0
      %s152 = scalar_select %p151, %s26, 0
      %s153 = smul.addr %s150, 3
      %s154 = sadd.s32 %s152, %s153
      %s155 = smul.addr %s154, 2
      %s156 = scalar_lea.vmem %s2, %s155
      %v157 = vld [vmem:[%s148] sm:$0x3]
      %s158 = sld [smem:[#allocation3]]
      %v159 = vstv %s158
      %v160 = vsub.f32 %v157, %v159
      %s161 = sld [smem:[#allocation3 + $0x80]]
      %v162 = vstv %s161
      %v163 = vmul.f32 %v160, %v162
      %vm164 = vcmp.ne.f32.partialorder %v163, %v163
      %v165 = vsel %vm164, 0.0, %v163
      %166 = vst [vmem:[%s156] sm:$0x3] %v165
      %s167 = scalar_lea.vmem %s148, 2
      %v168 = vld [vmem:[%s167] sm:$0x3]
      %s169 = sld [smem:[#allocation3 + $0x1]]
      %v170 = vstv %s169
      %v171 = vsub.f32 %v168, %v170
      %s172 = sld [smem:[#allocation3 + $0x81]]
      %v173 = vstv %s172
      %v174 = vmul.f32 %v171, %v173
      %vm175 = vcmp.ne.f32.partialorder %v174, %v174
      %v176 = vsel %vm175, 0.0, %v174
      %s177 = scalar_lea.vmem %s156, 2
      %178 = vst [vmem:[%s177] sm:$0x3] %v176
      %s179 = scalar_lea.vmem %s148, 4
      %v180 = vld [vmem:[%s179] sm:$0x3]
      %s181 = sld [smem:[#allocation3 + $0x2]]
      %v182 = vstv %s181
      %v183 = vsub.f32 %v180, %v182
      %s184 = sld [smem:[#allocation3 + $0x82]]
      %v185 = vstv %s184
      %v186 = vmul.f32 %v183, %v185
      %vm187 = vcmp.ne.f32.partialorder %v186, %v186
      %v188 = vsel %vm187, 0.0, %v186
      %s189 = scalar_lea.vmem %s156, 4
      %190 = vst [vmem:[%s189] sm:$0x3] %v188
      %p191 = scmp.lt.s32.totalorder %s25, 1
      %s192 = scalar_select %p191, %s25, 1
      %p193 = scmp.lt.s32.totalorder %s26, 0
      %s194 = scalar_select %p193, %s26, 0
      %s195 = smul.addr %s192, 3
      %s196 = sadd.s32 %s194, %s195
      %s197 = smul.addr %s196, 2
      %s198 = scalar_lea.vmem %s2, %s197
      // Predicated region
      $region25: #{preprocessing_forward.3} parent=23 // pred_check
        %p199 = pneg %p81
      $region26: #{preprocessing_forward.3} parent=23 // pred_check_branch
        %201 = sbr.rel (%p199) target = $region28
      $region27: #{preprocessing_forward.3} parent=23 // pred_region
        _
      $region28: #{preprocessing_forward.3} parent=23 // pred_fallthru
        _
    $region24: #{preprocessing_forward.3} parent=5 // pred_fallthru
      _
    %p202 = scmp.le.s32.totalorder 2, %s16
    // Predicated region
    $region29: #{preprocessing_forward.3} parent=5 // pred_check
      %p203 = pneg %p202
    $region30: #{preprocessing_forward.3} parent=5 // pred_check_branch
      %205 = sbr.rel (%p203) target = $region32
    $region31: #{preprocessing_forward.3} parent=5 // pred_region
      %s206 = ssub.s32 %s16, 2
      // Predicated region
      $region33: #{preprocessing_forward.3} parent=31 // pred_check
        %p207 = pneg %p87
      $region34: #{preprocessing_forward.3} parent=31 // pred_check_branch
        %209 = sbr.rel (%p207) target = $region36
      $region35: #{preprocessing_forward.3} parent=31 // pred_region
        %p210 = scmp.lt.s32.totalorder %s27, 1
        %s211 = scalar_select %p210, %s27, 1
        %p212 = scmp.lt.s32.totalorder %s28, 0
        %s213 = scalar_select %p212, %s28, 0
        %s214 = smul.addr %s211, 3
        %s215 = sadd.s32 %s213, %s214
        %s216 = smul.addr %s215, 2
        %s217 = scalar_lea.vmem %s2, %s216
      $region36: #{preprocessing_forward.3} parent=31 // pred_fallthru
        _
    $region32: #{preprocessing_forward.3} parent=5 // pred_fallthru
      _
  $region6: #{preprocessing_forward.3} parent=0 // loop_footer
    %s20 = sadd.s32 1, %s16
  $region7: #{preprocessing_forward.3} parent=0 // loop_footer_branch
    %15 = sbr.rel target = $region3
  $region8: #{preprocessing_forward.3} parent=0 // loop_exit
    _

// kernel: preprocessing_forward.2
$region0: #{preprocessing_forward.2}
  #allocation0 [shape = 'u32[]', space=smem, size = 0x4, offset = 0x4, fixed_abs, tag = 'smem constant byte address 0x4 - core index']
  #allocation1 [shape = 'u32[72,128]{1,0:T(1,128)}', space=vmem, size = 0x9000, scoped, tag = 'internal scratch']
  %s0 = inlined_call_operand.vmem [shape: f32[2,3,2,128], index: 0, kind: input, shape index: {}]
  %s1 = inlined_call_operand.vmem [shape: f32[2,3,3,128], index: 1, kind: output, shape index: {}]
  %s2 = sld [smem:[#allocation0]]
  $region41: #{preprocessing_forward.2} parent=0
    _
  %s4 = ssub.s32 1, %s2
  %s5 = scalar_select 0, %s4, %s2
  loop: start=0, step=1, limit=4
  $region2: #{preprocessing_forward.2} parent=0 // loop_pre_header
    _
  $region3: #{preprocessing_forward.2} parent=0 // loop_header
    %s7 = sphi 0, %s11
    %p8 = scmp.ge.s32.totalorder %s7, 4
    %s14 = sphi 0, %s26
    %s15 = sphi 0, %s22
    %s16 = sphi 0, %s14
    %s17 = sphi 0, %s15
    %s18 = sphi 0, %s16
    %s19 = sphi 0, %s17
    %s31 = sphi 0, %s33
    %s34 = sphi 0, %s31
    %s35 = sphi 0, %s34
    %s51 = sphi 0, %s35
    %s57 = sphi 0, %s59
    %s60 = sphi 0, %s57
    %s61 = sphi 0, %s60
    %s77 = sphi 0, %s61
  $region4: #{preprocessing_forward.2} parent=0 // loop_header_branch
    %10 = sbr.rel (%p8) target = $region8
  $region5: #{preprocessing_forward.2} parent=0 // loop_body
    %s12 = ssub.s32 %s7, 1
    %s13 = ssub.s32 %s7, 2
    %s20 = sadd.s32 1, %s15
    %p21 = scmp.ge.s32.totalorder %s20, 1
    %s22 = scalar_select %p21, 0, %s20
    %s23 = sadd.s32 1, %s14
    %s24 = scalar_select %p21, %s23, %s14
    %p25 = scmp.ge.s32.totalorder %s24, 2
    %s26 = scalar_select %p25, 0, %s24
    %s27 = ssub.s32 %s14, %s26
    %s28 = ssub.s32 %s15, %s22
    %s29 = sor.u32 %s27, %s28
    %p30 = scmp.eq.s32.totalorder %s29, 0
    %s32 = sadd.s32 %s31, 1
    %s33 = scalar_select %p30, %s31, %s32
    %p36 = pneg %p30
    %p37 = scmp.eq.s32.totalorder %s7, 1
    %p38 = por %p36, %p37
    %p39 = scmp.ne.s32.totalorder %s31, %s34
    %p40 = scmp.eq.s32.totalorder %s7, 0
    %p41 = por %p39, %p40
    %p42 = scmp.ne.s32.totalorder %s31, %s34
    %p43 = scmp.eq.s32.totalorder %s12, 1
    %p44 = por %p42, %p43
    %p45 = scmp.ne.s32.totalorder %s34, %s35
    %p46 = scmp.eq.s32.totalorder %s12, 0
    %p47 = por %p45, %p46
    %p48 = scmp.ne.s32.totalorder %s34, %s35
    %p49 = scmp.eq.s32.totalorder %s13, 1
    %p50 = por %p48, %p49
    %p52 = scmp.ne.s32.totalorder %s35, %s51
    %p53 = scmp.eq.s32.totalorder %s13, 0
    %p54 = por %p52, %p53
    %s55 = ssub.s32 %s14, %s26
    %p56 = scmp.eq.s32.totalorder %s55, 0
    %s58 = sadd.s32 %s57, 1
    %s59 = scalar_select %p56, %s57, %s58
    %p62 = pneg %p56
    %p63 = scmp.eq.s32.totalorder %s7, 1
    %p64 = por %p62, %p63
    %p65 = scmp.ne.s32.totalorder %s57, %s60
    %p66 = scmp.eq.s32.totalorder %s7, 0
    %p67 = por %p65, %p66
    %p68 = scmp.ne.s32.totalorder %s57, %s60
    %p69 = scmp.eq.s32.totalorder %s12, 1
    %p70 = por %p68, %p69
    %p71 = scmp.ne.s32.totalorder %s60, %s61
    %p72 = scmp.eq.s32.totalorder %s12, 0
    %p73 = por %p71, %p72
    %p74 = scmp.ne.s32.totalorder %s60, %s61
    %p75 = scmp.eq.s32.totalorder %s13, 1
    %p76 = por %p74, %p75
    %p78 = scmp.ne.s32.totalorder %s61, %s77
    %p79 = scmp.eq.s32.totalorder %s13, 0
    %p80 = por %p78, %p79
    %p81 = scmp.le.s32.totalorder 1, %s7
    %p82 = scmp.lt.s32.totalorder %s7, 3
    %p83 = pnand %p81, %p82
    %p84 = pneg %p83
    // Predicated region
    $region9: #{preprocessing_forward.2} parent=5 // pred_check
      _
    $region10: #{preprocessing_forward.2} parent=5 // pred_check_branch
      %86 = sbr.rel (%p83) target = $region12
    $region11: #{preprocessing_forward.2} parent=5 // pred_region
      %s87 = ssub.s32 %s7, 1
    $region12: #{preprocessing_forward.2} parent=5 // pred_fallthru
      _
    %p88 = scmp.lt.s32.totalorder %s7, 2
    // Predicated region
    $region13: #{preprocessing_forward.2} parent=5 // pred_check
      %p89 = pneg %p88
    $region14: #{preprocessing_forward.2} parent=5 // pred_check_branch
      %91 = sbr.rel (%p89) target = $region16
    $region15: #{preprocessing_forward.2} parent=5 // pred_region
      // Predicated region
      $region17: #{preprocessing_forward.2} parent=15 // pred_check
        %p92 = pneg %p41
      $region18: #{preprocessing_forward.2} parent=15 // pred_check_branch
        %94 = sbr.rel (%p92) target = $region20
      $region19: #{preprocessing_forward.2} parent=15 // pred_region
        %p95 = scmp.lt.s32.totalorder %s14, 1
        %s96 = scalar_select %p95, %s14, 1
        %p97 = scmp.lt.s32.totalorder %s15, 0
        %s98 = scalar_select %p97, %s15, 0
        %s99 = smul.addr %s96, 3
        %s100 = sadd.s32 %s98, %s99
        %s101 = smul.addr %s100, 2
        %s102 = scalar_lea.vmem %s0, %s101
      $region20: #{preprocessing_forward.2} parent=15 // pred_fallthru
        _
    $region16: #{preprocessing_forward.2} parent=5 // pred_fallthru
      _
    %p103 = scmp.le.s32.totalorder 1, %s7
    %p104 = scmp.lt.s32.totalorder %s7, 3
    %p105 = pnand %p103, %p104
    %p106 = pneg %p105
    // Predicated region
    $region21: #{preprocessing_forward.2} parent=5 // pred_check
      _
    $region22: #{preprocessing_forward.2} parent=5 // pred_check_branch
      %108 = sbr.rel (%p105) target = $region24
    $region23: #{preprocessing_forward.2} parent=5 // pred_region
      %s109 = ssub.s32 %s7, 1
      %p110 = scmp.lt.s32.totalorder %s16, 1
      %s111 = scalar_select %p110, %s16, 1
      %p112 = scmp.lt.s32.totalorder %s17, 0
      %s113 = scalar_select %p112, %s17, 0
      %s114 = smul.addr %s111, 3
      %s115 = sadd.s32 %s113, %s114
      %s116 = smul.addr %s115, 2
      %s117 = scalar_lea.vmem %s0, %s116
      %p118 = pneg %p47
      %p119 = pneg %p44
      %p120 = pneg %p73
      %p121 = pneg %p70
      %p122 = scmp.lt.s32.totalorder %s16, 1
      %s123 = scalar_select %p122, %s16, 1
      %s124 = smul.addr %s123, 3
      %s125 = smul.addr %s124, 4
      %s126 = scalar_lea.vmem %s1, %s125
      %p127 = scmp.lt.s32.totalorder %s16, 1
      %s128 = scalar_select %p127, %s16, 1
      %p129 = scmp.lt.s32.totalorder %s17, 0
      %s130 = scalar_select %p129, %s17, 0
      %s131 = smul.addr %s128, 3
      %s132 = sadd.s32 %s130, %s131
      %s133 = smul.addr %s132, 2
      %s134 = scalar_lea.vmem %s0, %s133
      %p135 = scmp.lt.s32.totalorder %s16, 1
      %s136 = scalar_select %p135, %s16, 1
      %s137 = smul.addr %s136, 3
      %s138 = smul.addr %s137, 4
      %s139 = scalar_lea.vmem %s1, %s138
      %p140 = scmp.eq.s32.totalorder %s17, 0
      // Predicated region
      $region25: #{preprocessing_forward.2} parent=23 // pred_check
        %p141 = pneg %p140
      $region26: #{preprocessing_forward.2} parent=23 // pred_check_branch
        %143 = sbr.rel (%p141) target = $region28
      $region27: #{preprocessing_forward.2} parent=23 // pred_region
        %144 = vst [vmem:[%s139] sm:$0x7] 0.0
        %145 = vst [vmem:[%s139 + $0x4] sm:$0x7] 0.0
        %146 = vst [vmem:[%s139 + $0x8] sm:$0x7] 0.0
      $region28: #{preprocessing_forward.2} parent=23 // pred_fallthru
        _
      %v147 = vld [vmem:[%s134] sm:$0x3]
      %vm148 = vcmp.ne.f32.partialorder %v147, %v147
      %vm149 = vmxor %vm148, 1
      %v150 = vsel %vm149, %v147, 0.0
      %v151 = vsel %vm149, 1, 0
      %v152 = vcvt.s32.f32 %v151
      %vm153 = vcmask 1041408
      %v154 = vsel %vm153, %v152, 0.0
      %v155 = vrot.slane %v154, 4
      %v156 = vadd.f32 %v154, %v155
      %v157 = vrot.slane %v156, 2
      %v158 = vadd.f32 %v156, %v157
      %v159 = vrot.slane %v158, 1
      %v160 = vadd.f32 %v158, %v159
      %v161 = vsel %vm153, %v150, 0.0
      %v162 = vrot.slane %v161, 4
      %v163 = vadd.f32 %v161, %v162
      %v164 = vrot.slane %v163, 2
      %v165 = vadd.f32 %v163, %v164
      %v166 = vrot.slane %v165, 1
      %v167 = vadd.f32 %v165, %v166
      %v168 = vmul.f32 %v150, %v150
      %v169 = vsel %vm153, %v168, 0.0
      %v170 = vrot.slane %v169, 4
      %v171 = vadd.f32 %v169, %v170
      %v172 = vrot.slane %v171, 2
      %v173 = vadd.f32 %v171, %v172
      %v174 = vrot.slane %v173, 1
      %v175 = vadd.f32 %v173, %v174
      %v176 = vld [vmem:[%s139] sm:$0x7]
      %vm177 = vcmask 1040384
      %v178 = vsel %vm177, %v160, %v167
      %v179 = vsel %vm153, %v178, %v175
      %v180 = vadd.f32 %v176, %v179
      %181 = vst [vmem:[%s139] sm:$0x7] %v180
      %s182 = scalar_lea.vmem %s134, 2
      %v183 = vld [vmem:[%s182] sm:$0x3]
      %vm184 = vcmp.ne.f32.partialorder %v183, %v183
      %vm185 = vmxor %vm184, 1
      %v186 = vsel %vm185, %v183, 0.0
      %v187 = vsel %vm185, 1, 0
      %v188 = vcvt.s32.f32 %v187
      %v189 = vsel %vm153, %v188, 0.0
      %v190 = vrot.slane %v189, 4
      %v191 = vadd.f32 %v189, %v190
      %v192 = vrot.slane %v191, 2
      %v193 = vadd.f32 %v191, %v192
      %v194 = vrot.slane %v193, 1
      %v195 = vadd.f32 %v193, %v194
      %v196 = vsel %vm153, %v186, 0.0
      %v197 = vrot.slane %v196, 4
      %v198 = vadd.f32 %v196, %v197
      %v199 = vrot.slane %v198, 2
      %v200 = vadd.f32 %v198, %v199
      %v201 = vrot.slane %v200, 1
      %v202 = vadd.f32 %v200, %v201
      %v203 = vmul.f32 %v186, %v186
      %v204 = vsel %vm153, %v203, 0.0
      %v205 = vrot.slane %v204, 4
      %v206 = vadd.f32 %v204, %v205
      %v207 = vrot.slane %v206, 2
      %v208 = vadd.f32 %v206, %v207
      %v209 = vrot.slane %v208, 1
      %v210 = vadd.f32 %v208, %v209
      %s211 = scalar_lea.vmem %s139, 4
      %v212 = vld [vmem:[%s211] sm:$0x7]
      %v213 = vsel %vm177, %v195, %v202
      %v214 = vsel %vm153, %v213, %v210
      %v215 = vadd.f32 %v212, %v214
      %216 = vst [vmem:[%s211] sm:$0x7] %v215
      %s217 = scalar_lea.vmem %s134, 4
      %v218 = vld [vmem:[%s217] sm:$0x3]
      %vm219 = vcmp.ne.f32.partialorder %v218, %v218
      %vm220 = vmxor %vm219, 1
      %v221 = vsel %vm220, %v218, 0.0
      %v222 = vsel %vm220, 1, 0
      %v223 = vcvt.s32.f32 %v222
      %v224 = vsel %vm153, %v223, 0.0
      %v225 = vrot.slane %v224, 4
      %v226 = vadd.f32 %v224, %v225
      %v227 = vrot.slane %v226, 2
      %v228 = vadd.f32 %v226, %v227
      %v229 = vrot.slane %v228, 1
      %v230 = vadd.f32 %v228, %v229
      %v231 = vsel %vm153, %v221, 0.0
      %v232 = vrot.slane %v231, 4
      %v233 = vadd.f32 %v231, %v232
      %v234 = vrot.slane %v233, 2
      %v235 = vadd.f32 %v233, %v234
      %v236 = vrot.slane %v235, 1
      %v237 = vadd.f32 %v235, %v236
      %v238 = vmul.f32 %v221, %v221
      %v239 = vsel %vm153, %v238, 0.0
      %v240 = vrot.slane %v239, 4
      %v241 = vadd.f32 %v239, %v240
      %v242 = vrot.slane %v241, 2
      %v243 = vadd.f32 %v241, %v242
      %v244 = vrot.slane %v243, 1
      %v245 = vadd.f32 %v243, %v244
      %s246 = scalar_lea.vmem %s139, 8
      %v247 = vld [vmem:[%s246] sm:$0x7]
      %v248 = vsel %vm177, %v230, %v237
      %v249 = vsel %vm153, %v248, %v245
      %v250 = vadd.f32 %v247, %v249
      %251 = vst [vmem:[%s246] sm:$0x7] %v250
      %p252 = scmp.lt.s32.totalorder %s16, 1
      %s253 = scalar_select %p252, %s16, 1
      %s254 = smul.addr %s253, 3
      %s255 = smul.addr %s254, 4
      %s256 = scalar_lea.vmem %s1, %s255
      // Predicated region
      $region29: #{preprocessing_forward.2} parent=23 // pred_check
        %p257 = pneg %p70
      $region30: #{preprocessing_forward.2} parent=23 // pred_check_branch
        %259 = sbr.rel (%p257) target = $region32
      $region31: #{preprocessing_forward.2} parent=23 // pred_region
        _
      $region32: #{preprocessing_forward.2} parent=23 // pred_fallthru
        _
    $region24: #{preprocessing_forward.2} parent=5 // pred_fallthru
      _
    %p260 = scmp.le.s32.totalorder 2, %s7
    // Predicated region
    $region33: #{preprocessing_forward.2} parent=5 // pred_check
      %p261 = pneg %p260
    $region34: #{preprocessing_forward.2} parent=5 // pred_check_branch
      %263 = sbr.rel (%p261) target = $region36
    $region35: #{preprocessing_forward.2} parent=5 // pred_region
      %s264 = ssub.s32 %s7, 2
      // Predicated region
      $region37: #{preprocessing_forward.2} parent=35 // pred_check
        %p265 = pneg %p76
      $region38: #{preprocessing_forward.2} parent=35 // pred_check_branch
        %267 = sbr.rel (%p265) target = $region40
      $region39: #{preprocessing_forward.2} parent=35 // pred_region
        %p268 = scmp.lt.s32.totalorder %s18, 1
        %s269 = scalar_select %p268, %s18, 1
        %s270 = smul.addr %s269, 3
        %s271 = smul.addr %s270, 4
        %s272 = scalar_lea.vmem %s1, %s271
      $region40: #{preprocessing_forward.2} parent=35 // pred_fallthru
        _
    $region36: #{preprocessing_forward.2} parent=5 // pred_fallthru
      _
  $region6: #{preprocessing_forward.2} parent=0 // loop_footer
    %s11 = sadd.s32 1, %s7
  $region7: #{preprocessing_forward.2} parent=0 // loop_footer_branch
    %6 = sbr.rel target = $region3
  $region8: #{preprocessing_forward.2} parent=0 // loop_exit
    _

</llo_original>
